<compile_context>
chip_gen: v7x
topology: tpu7x:2x2x1
jax: 0.10.0
libtpu: 0.0.40
codegen_flags: <defaults>
</compile_context>

<pallas_src>
import jax
import jax.numpy as jnp
from jax import lax
from jax.experimental import pallas as pl
from jax.experimental.pallas import tpu as pltpu

HIDDEN_DIM = 32
INPUT_SIZE = 1
OUTPUT_SIZE = 1
N_LAYERS = 1


def _rnn_kernel(h0_ref, x_ref, w_ih_ref, w_hh_ref, b_ref, w_fc_ref, b_fc_ref,
                out_ref, hn_ref, hs_ref):
    seq = x_ref.shape[0]

    # ---- one-time setup: hoist weight / bias loads out of the loop ---------
    w_ih = w_ih_ref[...]          # (1, hidden)   single row of W_ih^T
    b = b_ref[...]                # (1, hidden)   b_ih + b_hh folded
    w_hh = w_hh_ref[...]          # (hidden, hidden)  = W_hh^T

    # ---- serial recurrence: one VPU madd + one MXU matmul + one tanh / step -
    def step(t, h):
        # input projection for this step (input_size == 1 -> broadcast madd);
        # independent of h, so it co-issues in the VALU slot under the MXU.
        xp = x_ref[t] * w_ih + b                                  # (batch, hidden)
        h_new = jnp.tanh(
            xp + jnp.dot(h, w_hh, preferred_element_type=jnp.float32))
        # contiguous VMEM store, NOT on the h_t -> h_{t+1} dependency chain
        hs_ref[t] = h_new
        return h_new

    unroll = seq if seq <= 32 else 8      # bounded unroll for long sequences
    h_last = lax.fori_loop(0, seq, step, h0_ref[...], unroll=unroll)
    hn_ref[...] = h_last

    # ---- hoisted fc for ALL timesteps at once -------------------------------
    # output_size == 1: fc is a broadcast multiply + lane reduction over the
    # 32-wide hidden axis -> (seq, batch). Single dense block store (no
    # trailing size-1 dim, no per-step masked stores).
    o = (hs_ref[...] * w_fc_ref[...]).sum(axis=-1)                # (seq, batch)
    out_ref[...] = o + b_fc_ref[...]


def my_rnn_forward(x, hidden, params):
    """Mirrors myRNN.forward.

    x:      (batch, seq, input_size)  float32   (batch_first, like PyTorch)
    hidden: (n_layers=1, batch, hidden_dim)
    returns (output, hidden_out):
        output:     (batch*seq, output_size)
        hidden_out: (1, batch, hidden_dim)
    """
    batch, seq, input_size = x.shape
    assert input_size == 1, "kernel exploits input_size == 1 (per module spec)"
    hidden_dim = params["w_hh"].shape[0]
    output_size = params["w_fc"].shape[0]
    assert output_size == 1, "kernel exploits output_size == 1 (per module spec)"

    # time-major layout for the kernel
    x_tm = jnp.transpose(x, (1, 0, 2)).astype(jnp.float32)    # (seq, batch, 1)
    h0 = hidden[0].astype(jnp.float32)                        # (batch, hidden)

    w_ih_row = params["w_ih"].T                               # (1, hidden)
    w_hh_t = params["w_hh"].T                                 # (hidden, hidden)
    b_comb = (params["b_ih"] + params["b_hh"])[None, :]       # (1, hidden)
    w_fc_row = params["w_fc"]                                 # (1, hidden)
    b_fc = params["b_fc"][None, :]                            # (1, 1)

    # VMEM budget (bytes): x + hs scratch + out + weights, with headroom.
    vmem_need = 4 * (seq * batch * (input_size + hidden_dim + 1)
                     + batch * hidden_dim
                     + hidden_dim * hidden_dim
                     + 4 * hidden_dim)
    compiler_kwargs = dict(dimension_semantics=("arbitrary",))
    if vmem_need > (12 << 20):
        # Only kicks in for long sequences / packed batches (v5e default scoped
        # VMEM is 16 MiB); capped at 64 MiB so it remains valid on v7x.
        compiler_kwargs["vmem_limit_bytes"] = int(min(2 * vmem_need, 64 << 20))

    out_sb, hn = pl.pallas_call(
        _rnn_kernel,
        out_shape=(
            jax.ShapeDtypeStruct((seq, batch), jnp.float32),
            jax.ShapeDtypeStruct((batch, hidden_dim), jnp.float32),
        ),
        grid_spec=pltpu.PrefetchScalarGridSpec(
            num_scalar_prefetch=0,
            grid=(1,),   # single invocation: whole sequence resident in VMEM
            in_specs=[
                pl.BlockSpec((batch, hidden_dim), lambda i: (0, 0)),           # h0
                pl.BlockSpec((seq, batch, input_size), lambda i: (0, 0, 0)),   # x (all t)
                pl.BlockSpec((input_size, hidden_dim), lambda i: (0, 0)),      # W_ih^T
                pl.BlockSpec((hidden_dim, hidden_dim), lambda i: (0, 0)),      # W_hh^T
                pl.BlockSpec((1, hidden_dim), lambda i: (0, 0)),               # b_ih+b_hh
                pl.BlockSpec((output_size, hidden_dim), lambda i: (0, 0)),     # W_fc row
                pl.BlockSpec((1, output_size), lambda i: (0, 0)),              # b_fc
            ],
            out_specs=[
                pl.BlockSpec((seq, batch), lambda i: (0, 0)),                  # fc out, all t
                pl.BlockSpec((batch, hidden_dim), lambda i: (0, 0)),           # final hidden
            ],
            # per-step hidden states (consumed by the hoisted fc)
            scratch_shapes=[pltpu.VMEM((seq, batch, hidden_dim), jnp.float32)],
        ),
        compiler_params=pltpu.CompilerParams(**compiler_kwargs),
    )(h0, x_tm, w_ih_row, w_hh_t, b_comb, w_fc_row, b_fc)

    # PyTorch: r_out.view(-1, hidden_dim) with batch_first -> batch-major rows.
    output = out_sb.T.reshape(batch * seq, output_size)
    hidden_out = hn[None, :, :]
    return output, hidden_out


def _reference_forward(x, hidden, params):
    """Pure-JAX reference (lax.scan), same math as torch nn.RNN + Linear."""
    h0 = hidden[0]
    x_tm = jnp.transpose(x, (1, 0, 2))

    def step(h, x_t):
        h_new = jnp.tanh(x_t @ params["w_ih"].T + params["b_ih"]
                         + h @ params["w_hh"].T + params["b_hh"])
        return h_new, h_new

    h_last, hs = lax.scan(step, h0, x_tm)              # hs: (seq, batch, hidden)
    r_out = jnp.transpose(hs, (1, 0, 2))               # (batch, seq, hidden)
    r_out = r_out.reshape(-1, params["w_hh"].shape[0])
    out = r_out @ params["w_fc"].T + params["b_fc"]
    return out, h_last[None]


def init_params(key, input_size, hidden_dim, output_size):
    # deterministic init, same shapes as PyTorch nn.RNN / nn.Linear
    ks = jax.random.split(key, 6)
    s_rnn = 1.0 / jnp.sqrt(hidden_dim)
    s_fc = 1.0 / jnp.sqrt(hidden_dim)
    return {
        "w_ih": jax.random.uniform(ks[0], (hidden_dim, input_size), jnp.float32, -s_rnn, s_rnn),
        "w_hh": jax.random.uniform(ks[1], (hidden_dim, hidden_dim), jnp.float32, -s_rnn, s_rnn),
        "b_ih": jax.random.uniform(ks[2], (hidden_dim,), jnp.float32, -s_rnn, s_rnn),
        "b_hh": jax.random.uniform(ks[3], (hidden_dim,), jnp.float32, -s_rnn, s_rnn),
        "w_fc": jax.random.uniform(ks[4], (output_size, hidden_dim), jnp.float32, -s_fc, s_fc),
        "b_fc": jax.random.uniform(ks[5], (output_size,), jnp.float32, -s_fc, s_fc),
    }


if __name__ == "__main__":
    # NOTE: kept at the small spec-consistent shapes. For real workloads, pack
    # more independent sequences into `batch` (the per-step MXU latency is
    # fixed, so throughput scales ~linearly with packed rows).
    batch, seq = 2, 8
    key = jax.random.PRNGKey(0)
    k_x, k_h, k_p = jax.random.split(key, 3)

    x = jax.random.normal(k_x, (batch, seq, INPUT_SIZE), jnp.float32)
    h0 = jax.random.normal(k_h, (N_LAYERS, batch, HIDDEN_DIM), jnp.float32)
    params = init_params(k_p, INPUT_SIZE, HIDDEN_DIM, OUTPUT_SIZE)

    out, hn = my_rnn_forward(x, h0, params)
    out, hn = jax.block_until_ready(out), jax.block_until_ready(hn)

    ref_out, ref_hn = _reference_forward(x, h0, params)
    assert out.shape == (batch * seq, OUTPUT_SIZE)
    assert hn.shape == (N_LAYERS, batch, HIDDEN_DIM)
    assert jnp.allclose(out, ref_out, atol=1e-5, rtol=1e-5)
    assert jnp.allclose(hn, ref_hn, atol=1e-5, rtol=1e-5)

    print("KERNEL_OK")
</pallas_src>

<mosaic_0001>
module attributes {stable_mosaic.version = 11 : i64} {
  func.func @_rnn_kernel(%arg0: i32, %arg1: memref<2x32xf32, #tpu.memory_space<vmem>>, %arg2: memref<8x2x1xf32, #tpu.memory_space<vmem>>, %arg3: memref<1x32xf32, #tpu.memory_space<vmem>>, %arg4: memref<32x32xf32, #tpu.memory_space<vmem>>, %arg5: memref<1x32xf32, #tpu.memory_space<vmem>>, %arg6: memref<1x32xf32, #tpu.memory_space<vmem>>, %arg7: memref<1x1xf32, #tpu.memory_space<vmem>>, %arg8: memref<8x2xf32, #tpu.memory_space<vmem>>, %arg9: memref<2x32xf32, #tpu.memory_space<vmem>>, %arg10: memref<8x2x32xf32, #tpu.memory_space<vmem>>) attributes {dimension_semantics = [#tpu.dimension_semantics<arbitrary>], iteration_bounds = array<i64: 1>, scalar_prefetch = 0 : i64, scratch_operands = 1 : i64, tpu.core_type = #tpu.core_type<tc>, window_params = [{pipeline_mode = #tpu.pipeline_mode<synchronous>, transform_indices = @transform_0, window_bounds = array<i64: 2, 32>}, {pipeline_mode = #tpu.pipeline_mode<synchronous>, transform_indices = @transform_1, window_bounds = array<i64: 8, 2, 1>}, {pipeline_mode = #tpu.pipeline_mode<synchronous>, transform_indices = @transform_2, window_bounds = array<i64: 1, 32>}, {pipeline_mode = #tpu.pipeline_mode<synchronous>, transform_indices = @transform_3, window_bounds = array<i64: 32, 32>}, {pipeline_mode = #tpu.pipeline_mode<synchronous>, transform_indices = @transform_4, window_bounds = array<i64: 1, 32>}, {pipeline_mode = #tpu.pipeline_mode<synchronous>, transform_indices = @transform_5, window_bounds = array<i64: 1, 32>}, {pipeline_mode = #tpu.pipeline_mode<synchronous>, transform_indices = @transform_6, window_bounds = array<i64: 1, 1>}, {pipeline_mode = #tpu.pipeline_mode<synchronous>, transform_indices = @transform_7, window_bounds = array<i64: 8, 2>}, {pipeline_mode = #tpu.pipeline_mode<synchronous>, transform_indices = @transform_8, window_bounds = array<i64: 2, 32>}]} {
    %c0 = arith.constant 0 : index
    %c0_0 = arith.constant 0 : index
    %0 = vector.load %arg3[%c0, %c0_0] : memref<1x32xf32, #tpu.memory_space<vmem>>, vector<1x32xf32>
    %c0_1 = arith.constant 0 : index
    %c0_2 = arith.constant 0 : index
    %1 = vector.load %arg5[%c0_1, %c0_2] : memref<1x32xf32, #tpu.memory_space<vmem>>, vector<1x32xf32>
    %c0_3 = arith.constant 0 : index
    %c0_4 = arith.constant 0 : index
    %2 = vector.load %arg4[%c0_3, %c0_4] : memref<32x32xf32, #tpu.memory_space<vmem>>, vector<32x32xf32>
    %c0_5 = arith.constant 0 : index
    %c0_6 = arith.constant 0 : index
    %3 = vector.load %arg1[%c0_5, %c0_6] : memref<2x32xf32, #tpu.memory_space<vmem>>, vector<2x32xf32>
    %c0_i32 = arith.constant 0 : i32
    %4 = arith.index_cast %c0_i32 : i32 to index
    %c0_7 = arith.constant 0 : index
    %c0_8 = arith.constant 0 : index
    %5 = vector.load %arg2[%4, %c0_7, %c0_8] : memref<8x2x1xf32, #tpu.memory_space<vmem>>, vector<1x2x1xf32>
    %6 = vector.shape_cast %5 : vector<1x2x1xf32> to vector<2x1xf32>
    %7 = vector.broadcast %6 : vector<2x1xf32> to vector<2x32xf32>
    %8 = vector.broadcast %0 : vector<1x32xf32> to vector<2x32xf32>
    %9 = arith.mulf %7, %8 : vector<2x32xf32>
    %10 = vector.broadcast %1 : vector<1x32xf32> to vector<2x32xf32>
    %11 = arith.addf %9, %10 : vector<2x32xf32>
    %cst = arith.constant dense<0.000000e+00> : vector<2x32xf32>
    %12 = tpu.matmul %3, %2, %cst {dimension_numbers = #tpu.dot_dimension_numbers<[1], [0], [0], [1], [0, 0, 1, 1], [], []>} : vector<2x32xf32>, vector<32x32xf32>, vector<2x32xf32> -> vector<2x32xf32>
    %13 = arith.addf %11, %12 : vector<2x32xf32>
    %14 = math.tanh %13 : vector<2x32xf32>
    %15 = arith.index_cast %c0_i32 : i32 to index
    %c0_9 = arith.constant 0 : index
    %c0_10 = arith.constant 0 : index
    %16 = vector.load %arg10[%15, %c0_9, %c0_10] : memref<8x2x32xf32, #tpu.memory_space<vmem>>, vector<1x2x32xf32>
    %17 = vector.shape_cast %16 : vector<1x2x32xf32> to vector<2x32xf32>
    %18 = vector.shape_cast %14 : vector<2x32xf32> to vector<1x2x32xf32>
    tpu.vector_store %arg10[%15, %c0_9, %c0_10], %18 {strides = array<i32>} : memref<8x2x32xf32, #tpu.memory_space<vmem>>, vector<1x2x32xf32>,
    %c1_i32 = arith.constant 1 : i32
    %19 = arith.index_cast %c1_i32 : i32 to index
    %c0_11 = arith.constant 0 : index
    %c0_12 = arith.constant 0 : index
    %20 = vector.load %arg2[%19, %c0_11, %c0_12] : memref<8x2x1xf32, #tpu.memory_space<vmem>>, vector<1x2x1xf32>
    %21 = vector.shape_cast %20 : vector<1x2x1xf32> to vector<2x1xf32>
    %22 = vector.broadcast %21 : vector<2x1xf32> to vector<2x32xf32>
    %23 = vector.broadcast %0 : vector<1x32xf32> to vector<2x32xf32>
    %24 = arith.mulf %22, %23 : vector<2x32xf32>
    %25 = vector.broadcast %1 : vector<1x32xf32> to vector<2x32xf32>
    %26 = arith.addf %24, %25 : vector<2x32xf32>
    %cst_13 = arith.constant dense<0.000000e+00> : vector<2x32xf32>
    %27 = tpu.matmul %14, %2, %cst_13 {dimension_numbers = #tpu.dot_dimension_numbers<[1], [0], [0], [1], [0, 0, 1, 1], [], []>} : vector<2x32xf32>, vector<32x32xf32>, vector<2x32xf32> -> vector<2x32xf32>
    %28 = arith.addf %26, %27 : vector<2x32xf32>
    %29 = math.tanh %28 : vector<2x32xf32>
    %30 = arith.index_cast %c1_i32 : i32 to index
    %c0_14 = arith.constant 0 : index
    %c0_15 = arith.constant 0 : index
    %31 = vector.load %arg10[%30, %c0_14, %c0_15] : memref<8x2x32xf32, #tpu.memory_space<vmem>>, vector<1x2x32xf32>
    %32 = vector.shape_cast %31 : vector<1x2x32xf32> to vector<2x32xf32>
    %33 = vector.shape_cast %29 : vector<2x32xf32> to vector<1x2x32xf32>
    tpu.vector_store %arg10[%30, %c0_14, %c0_15], %33 {strides = array<i32>} : memref<8x2x32xf32, #tpu.memory_space<vmem>>, vector<1x2x32xf32>,
    %c2_i32 = arith.constant 2 : i32
    %34 = arith.index_cast %c2_i32 : i32 to index
    %c0_16 = arith.constant 0 : index
    %c0_17 = arith.constant 0 : index
    %35 = vector.load %arg2[%34, %c0_16, %c0_17] : memref<8x2x1xf32, #tpu.memory_space<vmem>>, vector<1x2x1xf32>
    %36 = vector.shape_cast %35 : vector<1x2x1xf32> to vector<2x1xf32>
    %37 = vector.broadcast %36 : vector<2x1xf32> to vector<2x32xf32>
    %38 = vector.broadcast %0 : vector<1x32xf32> to vector<2x32xf32>
    %39 = arith.mulf %37, %38 : vector<2x32xf32>
    %40 = vector.broadcast %1 : vector<1x32xf32> to vector<2x32xf32>
    %41 = arith.addf %39, %40 : vector<2x32xf32>
    %cst_18 = arith.constant dense<0.000000e+00> : vector<2x32xf32>
    %42 = tpu.matmul %29, %2, %cst_18 {dimension_numbers = #tpu.dot_dimension_numbers<[1], [0], [0], [1], [0, 0, 1, 1], [], []>} : vector<2x32xf32>, vector<32x32xf32>, vector<2x32xf32> -> vector<2x32xf32>
    %43 = arith.addf %41, %42 : vector<2x32xf32>
    %44 = math.tanh %43 : vector<2x32xf32>
    %45 = arith.index_cast %c2_i32 : i32 to index
    %c0_19 = arith.constant 0 : index
    %c0_20 = arith.constant 0 : index
    %46 = vector.load %arg10[%45, %c0_19, %c0_20] : memref<8x2x32xf32, #tpu.memory_space<vmem>>, vector<1x2x32xf32>
    %47 = vector.shape_cast %46 : vector<1x2x32xf32> to vector<2x32xf32>
    %48 = vector.shape_cast %44 : vector<2x32xf32> to vector<1x2x32xf32>
    tpu.vector_store %arg10[%45, %c0_19, %c0_20], %48 {strides = array<i32>} : memref<8x2x32xf32, #tpu.memory_space<vmem>>, vector<1x2x32xf32>,
    %c3_i32 = arith.constant 3 : i32
    %49 = arith.index_cast %c3_i32 : i32 to index
    %c0_21 = arith.constant 0 : index
    %c0_22 = arith.constant 0 : index
    %50 = vector.load %arg2[%49, %c0_21, %c0_22] : memref<8x2x1xf32, #tpu.memory_space<vmem>>, vector<1x2x1xf32>
    %51 = vector.shape_cast %50 : vector<1x2x1xf32> to vector<2x1xf32>
    %52 = vector.broadcast %51 : vector<2x1xf32> to vector<2x32xf32>
    %53 = vector.broadcast %0 : vector<1x32xf32> to vector<2x32xf32>
    %54 = arith.mulf %52, %53 : vector<2x32xf32>
    %55 = vector.broadcast %1 : vector<1x32xf32> to vector<2x32xf32>
    %56 = arith.addf %54, %55 : vector<2x32xf32>
    %cst_23 = arith.constant dense<0.000000e+00> : vector<2x32xf32>
    %57 = tpu.matmul %44, %2, %cst_23 {dimension_numbers = #tpu.dot_dimension_numbers<[1], [0], [0], [1], [0, 0, 1, 1], [], []>} : vector<2x32xf32>, vector<32x32xf32>, vector<2x32xf32> -> vector<2x32xf32>
    %58 = arith.addf %56, %57 : vector<2x32xf32>
    %59 = math.tanh %58 : vector<2x32xf32>
    %60 = arith.index_cast %c3_i32 : i32 to index
    %c0_24 = arith.constant 0 : index
    %c0_25 = arith.constant 0 : index
    %61 = vector.load %arg10[%60, %c0_24, %c0_25] : memref<8x2x32xf32, #tpu.memory_space<vmem>>, vector<1x2x32xf32>
    %62 = vector.shape_cast %61 : vector<1x2x32xf32> to vector<2x32xf32>
    %63 = vector.shape_cast %59 : vector<2x32xf32> to vector<1x2x32xf32>
    tpu.vector_store %arg10[%60, %c0_24, %c0_25], %63 {strides = array<i32>} : memref<8x2x32xf32, #tpu.memory_space<vmem>>, vector<1x2x32xf32>,
    %c4_i32 = arith.constant 4 : i32
    %64 = arith.index_cast %c4_i32 : i32 to index
    %c0_26 = arith.constant 0 : index
    %c0_27 = arith.constant 0 : index
    %65 = vector.load %arg2[%64, %c0_26, %c0_27] : memref<8x2x1xf32, #tpu.memory_space<vmem>>, vector<1x2x1xf32>
    %66 = vector.shape_cast %65 : vector<1x2x1xf32> to vector<2x1xf32>
    %67 = vector.broadcast %66 : vector<2x1xf32> to vector<2x32xf32>
    %68 = vector.broadcast %0 : vector<1x32xf32> to vector<2x32xf32>
    %69 = arith.mulf %67, %68 : vector<2x32xf32>
    %70 = vector.broadcast %1 : vector<1x32xf32> to vector<2x32xf32>
    %71 = arith.addf %69, %70 : vector<2x32xf32>
    %cst_28 = arith.constant dense<0.000000e+00> : vector<2x32xf32>
    %72 = tpu.matmul %59, %2, %cst_28 {dimension_numbers = #tpu.dot_dimension_numbers<[1], [0], [0], [1], [0, 0, 1, 1], [], []>} : vector<2x32xf32>, vector<32x32xf32>, vector<2x32xf32> -> vector<2x32xf32>
    %73 = arith.addf %71, %72 : vector<2x32xf32>
    %74 = math.tanh %73 : vector<2x32xf32>
    %75 = arith.index_cast %c4_i32 : i32 to index
    %c0_29 = arith.constant 0 : index
    %c0_30 = arith.constant 0 : index
    %76 = vector.load %arg10[%75, %c0_29, %c0_30] : memref<8x2x32xf32, #tpu.memory_space<vmem>>, vector<1x2x32xf32>
    %77 = vector.shape_cast %76 : vector<1x2x32xf32> to vector<2x32xf32>
    %78 = vector.shape_cast %74 : vector<2x32xf32> to vector<1x2x32xf32>
    tpu.vector_store %arg10[%75, %c0_29, %c0_30], %78 {strides = array<i32>} : memref<8x2x32xf32, #tpu.memory_space<vmem>>, vector<1x2x32xf32>,
    %c5_i32 = arith.constant 5 : i32
    %79 = arith.index_cast %c5_i32 : i32 to index
    %c0_31 = arith.constant 0 : index
    %c0_32 = arith.constant 0 : index
    %80 = vector.load %arg2[%79, %c0_31, %c0_32] : memref<8x2x1xf32, #tpu.memory_space<vmem>>, vector<1x2x1xf32>
    %81 = vector.shape_cast %80 : vector<1x2x1xf32> to vector<2x1xf32>
    %82 = vector.broadcast %81 : vector<2x1xf32> to vector<2x32xf32>
    %83 = vector.broadcast %0 : vector<1x32xf32> to vector<2x32xf32>
    %84 = arith.mulf %82, %83 : vector<2x32xf32>
    %85 = vector.broadcast %1 : vector<1x32xf32> to vector<2x32xf32>
    %86 = arith.addf %84, %85 : vector<2x32xf32>
    %cst_33 = arith.constant dense<0.000000e+00> : vector<2x32xf32>
    %87 = tpu.matmul %74, %2, %cst_33 {dimension_numbers = #tpu.dot_dimension_numbers<[1], [0], [0], [1], [0, 0, 1, 1], [], []>} : vector<2x32xf32>, vector<32x32xf32>, vector<2x32xf32> -> vector<2x32xf32>
    %88 = arith.addf %86, %87 : vector<2x32xf32>
    %89 = math.tanh %88 : vector<2x32xf32>
    %90 = arith.index_cast %c5_i32 : i32 to index
    %c0_34 = arith.constant 0 : index
    %c0_35 = arith.constant 0 : index
    %91 = vector.load %arg10[%90, %c0_34, %c0_35] : memref<8x2x32xf32, #tpu.memory_space<vmem>>, vector<1x2x32xf32>
    %92 = vector.shape_cast %91 : vector<1x2x32xf32> to vector<2x32xf32>
    %93 = vector.shape_cast %89 : vector<2x32xf32> to vector<1x2x32xf32>
    tpu.vector_store %arg10[%90, %c0_34, %c0_35], %93 {strides = array<i32>} : memref<8x2x32xf32, #tpu.memory_space<vmem>>, vector<1x2x32xf32>,
    %c6_i32 = arith.constant 6 : i32
    %94 = arith.index_cast %c6_i32 : i32 to index
    %c0_36 = arith.constant 0 : index
    %c0_37 = arith.constant 0 : index
    %95 = vector.load %arg2[%94, %c0_36, %c0_37] : memref<8x2x1xf32, #tpu.memory_space<vmem>>, vector<1x2x1xf32>
    %96 = vector.shape_cast %95 : vector<1x2x1xf32> to vector<2x1xf32>
    %97 = vector.broadcast %96 : vector<2x1xf32> to vector<2x32xf32>
    %98 = vector.broadcast %0 : vector<1x32xf32> to vector<2x32xf32>
    %99 = arith.mulf %97, %98 : vector<2x32xf32>
    %100 = vector.broadcast %1 : vector<1x32xf32> to vector<2x32xf32>
    %101 = arith.addf %99, %100 : vector<2x32xf32>
    %cst_38 = arith.constant dense<0.000000e+00> : vector<2x32xf32>
    %102 = tpu.matmul %89, %2, %cst_38 {dimension_numbers = #tpu.dot_dimension_numbers<[1], [0], [0], [1], [0, 0, 1, 1], [], []>} : vector<2x32xf32>, vector<32x32xf32>, vector<2x32xf32> -> vector<2x32xf32>
    %103 = arith.addf %101, %102 : vector<2x32xf32>
    %104 = math.tanh %103 : vector<2x32xf32>
    %105 = arith.index_cast %c6_i32 : i32 to index
    %c0_39 = arith.constant 0 : index
    %c0_40 = arith.constant 0 : index
    %106 = vector.load %arg10[%105, %c0_39, %c0_40] : memref<8x2x32xf32, #tpu.memory_space<vmem>>, vector<1x2x32xf32>
    %107 = vector.shape_cast %106 : vector<1x2x32xf32> to vector<2x32xf32>
    %108 = vector.shape_cast %104 : vector<2x32xf32> to vector<1x2x32xf32>
    tpu.vector_store %arg10[%105, %c0_39, %c0_40], %108 {strides = array<i32>} : memref<8x2x32xf32, #tpu.memory_space<vmem>>, vector<1x2x32xf32>,
    %c7_i32 = arith.constant 7 : i32
    %109 = arith.index_cast %c7_i32 : i32 to index
    %c0_41 = arith.constant 0 : index
    %c0_42 = arith.constant 0 : index
    %110 = vector.load %arg2[%109, %c0_41, %c0_42] : memref<8x2x1xf32, #tpu.memory_space<vmem>>, vector<1x2x1xf32>
    %111 = vector.shape_cast %110 : vector<1x2x1xf32> to vector<2x1xf32>
    %112 = vector.broadcast %111 : vector<2x1xf32> to vector<2x32xf32>
    %113 = vector.broadcast %0 : vector<1x32xf32> to vector<2x32xf32>
    %114 = arith.mulf %112, %113 : vector<2x32xf32>
    %115 = vector.broadcast %1 : vector<1x32xf32> to vector<2x32xf32>
    %116 = arith.addf %114, %115 : vector<2x32xf32>
    %cst_43 = arith.constant dense<0.000000e+00> : vector<2x32xf32>
    %117 = tpu.matmul %104, %2, %cst_43 {dimension_numbers = #tpu.dot_dimension_numbers<[1], [0], [0], [1], [0, 0, 1, 1], [], []>} : vector<2x32xf32>, vector<32x32xf32>, vector<2x32xf32> -> vector<2x32xf32>
    %118 = arith.addf %116, %117 : vector<2x32xf32>
    %119 = math.tanh %118 : vector<2x32xf32>
    %120 = arith.index_cast %c7_i32 : i32 to index
    %c0_44 = arith.constant 0 : index
    %c0_45 = arith.constant 0 : index
    %121 = vector.load %arg10[%120, %c0_44, %c0_45] : memref<8x2x32xf32, #tpu.memory_space<vmem>>, vector<1x2x32xf32>
    %122 = vector.shape_cast %121 : vector<1x2x32xf32> to vector<2x32xf32>
    %123 = vector.shape_cast %119 : vector<2x32xf32> to vector<1x2x32xf32>
    tpu.vector_store %arg10[%120, %c0_44, %c0_45], %123 {strides = array<i32>} : memref<8x2x32xf32, #tpu.memory_space<vmem>>, vector<1x2x32xf32>,
    %c8_i32 = arith.constant 8 : i32
    %c0_46 = arith.constant 0 : index
    %c0_47 = arith.constant 0 : index
    %124 = vector.load %arg9[%c0_46, %c0_47] : memref<2x32xf32, #tpu.memory_space<vmem>>, vector<2x32xf32>
    tpu.vector_store %arg9[%c0_46, %c0_47], %119 {strides = array<i32>} : memref<2x32xf32, #tpu.memory_space<vmem>>, vector<2x32xf32>,
    %c0_48 = arith.constant 0 : index
    %c0_49 = arith.constant 0 : index
    %c0_50 = arith.constant 0 : index
    %125 = vector.load %arg10[%c0_48, %c0_49, %c0_50] : memref<8x2x32xf32, #tpu.memory_space<vmem>>, vector<8x2x32xf32>
    %c0_51 = arith.constant 0 : index
    %c0_52 = arith.constant 0 : index
    %126 = vector.load %arg6[%c0_51, %c0_52] : memref<1x32xf32, #tpu.memory_space<vmem>>, vector<1x32xf32>
    %127 = vector.shape_cast %126 : vector<1x32xf32> to vector<1x1x32xf32>
    %128 = vector.broadcast %127 : vector<1x1x32xf32> to vector<8x2x32xf32>
    %129 = arith.mulf %125, %128 : vector<8x2x32xf32>
    %cst_53 = arith.constant dense<0.000000e+00> : vector<8x2xf32>
    %130 = vector.multi_reduction <add>, %129, %cst_53 [2] : vector<8x2x32xf32> to vector<8x2xf32>
    %c0_54 = arith.constant 0 : index
    %c0_55 = arith.constant 0 : index
    %131 = vector.load %arg7[%c0_54, %c0_55] : memref<1x1xf32, #tpu.memory_space<vmem>>, vector<1x1xf32>
    %132 = vector.broadcast %131 : vector<1x1xf32> to vector<8x2xf32>
    %133 = arith.addf %130, %132 : vector<8x2xf32>
    %c0_56 = arith.constant 0 : index
    %c0_57 = arith.constant 0 : index
    %134 = vector.load %arg8[%c0_56, %c0_57] : memref<8x2xf32, #tpu.memory_space<vmem>>, vector<8x2xf32>
    tpu.vector_store %arg8[%c0_56, %c0_57], %133 {strides = array<i32>} : memref<8x2xf32, #tpu.memory_space<vmem>>, vector<8x2xf32>,
    return
  }
  func.func @transform_0(%arg0: i32) -> (i32, i32) {
    %c0_i32 = arith.constant 0 : i32
    %c0_i32_0 = arith.constant 0 : i32
    %c0_i32_1 = arith.constant 0 : i32
    return %c0_i32, %c0_i32_0 : i32, i32
  }
  func.func @transform_1(%arg0: i32) -> (i32, i32, i32) {
    %c0_i32 = arith.constant 0 : i32
    %c0_i32_0 = arith.constant 0 : i32
    %c0_i32_1 = arith.constant 0 : i32
    %c0_i32_2 = arith.constant 0 : i32
    return %c0_i32, %c0_i32_0, %c0_i32_1 : i32, i32, i32
  }
  func.func @transform_2(%arg0: i32) -> (i32, i32) {
    %c0_i32 = arith.constant 0 : i32
    %c0_i32_0 = arith.constant 0 : i32
    %c0_i32_1 = arith.constant 0 : i32
    return %c0_i32, %c0_i32_0 : i32, i32
  }
  func.func @transform_3(%arg0: i32) -> (i32, i32) {
    %c0_i32 = arith.constant 0 : i32
    %c0_i32_0 = arith.constant 0 : i32
    %c0_i32_1 = arith.constant 0 : i32
    return %c0_i32, %c0_i32_0 : i32, i32
  }
  func.func @transform_4(%arg0: i32) -> (i32, i32) {
    %c0_i32 = arith.constant 0 : i32
    %c0_i32_0 = arith.constant 0 : i32
    %c0_i32_1 = arith.constant 0 : i32
    return %c0_i32, %c0_i32_0 : i32, i32
  }
  func.func @transform_5(%arg0: i32) -> (i32, i32) {
    %c0_i32 = arith.constant 0 : i32
    %c0_i32_0 = arith.constant 0 : i32
    %c0_i32_1 = arith.constant 0 : i32
    return %c0_i32, %c0_i32_0 : i32, i32
  }
  func.func @transform_6(%arg0: i32) -> (i32, i32) {
    %c0_i32 = arith.constant 0 : i32
    %c0_i32_0 = arith.constant 0 : i32
    %c0_i32_1 = arith.constant 0 : i32
    return %c0_i32, %c0_i32_0 : i32, i32
  }
  func.func @transform_7(%arg0: i32) -> (i32, i32) {
    %c0_i32 = arith.constant 0 : i32
    %c0_i32_0 = arith.constant 0 : i32
    %c0_i32_1 = arith.constant 0 : i32
    return %c0_i32, %c0_i32_0 : i32, i32
  }
  func.func @transform_8(%arg0: i32) -> (i32, i32) {
    %c0_i32 = arith.constant 0 : i32
    %c0_i32_0 = arith.constant 0 : i32
    %c0_i32_1 = arith.constant 0 : i32
    return %c0_i32, %c0_i32_0 : i32, i32
  }
}

</mosaic_0001>

<llo_original>
// kernel: tpu_custom_call.1
$region0: #{tpu_custom_call.1}
  #allocation0 [shape = 'u32[]', space=smem, size = 0x4, offset = 0x4, fixed_abs, tag = 'smem constant byte address 0x4 - core index']
  #allocation1 [shape = 'u32[144,128]{1,0:T(1,128)}', space=vmem, size = 0x12000, scoped, tag = 'internal scratch']
  #allocation2 [shape = 'f32[8,2,32]{2,1,0:T(2,128)}', space=vmem, size = 0x2000, scoped, tag = 'scratch operand']
  #allocation3 [shape = 'f32[1,1]{1,0:T(1,128)S(1)}', space=vmem, size = 0x200, scoped, tag = 'scoped memory for tpu_custom_call.1']
  %s0 = inlined_call_operand.hbm [shape: f32[2,32], index: 0, kind: input, shape index: {}]
  %s1 = inlined_call_operand.vmem [shape: f32[8,2,1], index: 1, kind: input, shape index: {}]
  %s2 = inlined_call_operand.vmem [shape: f32[1,32], index: 2, kind: input, shape index: {}]
  %s3 = inlined_call_operand.vmem [shape: f32[32,32], index: 3, kind: input, shape index: {}]
  %s4 = inlined_call_operand.vmem [shape: f32[1,32], index: 4, kind: input, shape index: {}]
  %s5 = inlined_call_operand.vmem [shape: f32[1,32], index: 5, kind: input, shape index: {}]
  %s6 = inlined_call_operand.<no memory space> [shape: f32[1,1], index: 6, kind: input, shape index: {}]
  %s7 = inlined_call_operand.vmem [shape: f32[8,2], index: 7, kind: output, shape index: {0}]
  %s8 = inlined_call_operand.hbm [shape: f32[2,32], index: 8, kind: output, shape index: {1}]
  %9 = xla_tuple %s7, %s8
  %s10 = sld [smem:[#allocation0]]
  $region50: #{tpu_custom_call.1} parent=0
    _
  %s12 = ssub.s32 1, %s10
  %s13 = scalar_select 0, %s12, %s10
  %v14 = vstv %s6
  %15 = vst [vmem:[#allocation3] sm:$0x1] %v14
  $region1: #{tpu_custom_call.1} parent=0
    #allocation4 [shape = 'u8[1024]{0}', space=vmem, size = 0x400, scoped, tag = 'input window, operand 0, single buffered']
    #allocation5 [shape = 's32[1]{0}', space=sflag, size = 0x4, scoped, tag = 'scoped memory for tpu_custom_call.1']
    #allocation6 [shape = 's32[1]{0}', space=sflag, size = 0x4, scoped, tag = 'scoped memory for tpu_custom_call.1']
    #allocation7 [shape = 'u8[1024]{0}', space=vmem, size = 0x400, scoped, tag = 'output window, operand 1, single buffered']
    %16 = vsyncpa [#allocation5], 0
    %17 = vsyncpa [#allocation6], 0
    // Predicated region
    $region2: #{tpu_custom_call.1} parent=1 // pred_check
      _
    $region3: #{tpu_custom_call.1} parent=1 // pred_check_branch
      %19 = sbr.rel (0) target = $region5
    $region4: #{tpu_custom_call.1} parent=1 // pred_region
      %s21 = ssub.s32 32, 32
      %22 = vsyncadd [#allocation5], %s21
      %s24 = sshll.u32 [#allocation4], 4
      %s25 = int_to_ptr.vmem [resolvable:$true] %s24
      %27 = dma.hbm_to_vmem [thread:$0]  %s0, 32, %s25, [#allocation5]
    $region5: #{tpu_custom_call.1} parent=1 // pred_fallthru
      _
    // Predicated region
    $region6: #{tpu_custom_call.1} parent=1 // pred_check
      _
    $region7: #{tpu_custom_call.1} parent=1 // pred_check_branch
      %29 = sbr.rel (0) target = $region9
    $region8: #{tpu_custom_call.1} parent=1 // pred_region
      _
    $region9: #{tpu_custom_call.1} parent=1 // pred_fallthru
      _
    // Predicated region
    $region10: #{tpu_custom_call.1} parent=1 // pred_check
      _
    $region11: #{tpu_custom_call.1} parent=1 // pred_check_branch
      %31 = sbr.rel (0) target = $region13
    $region12: #{tpu_custom_call.1} parent=1 // pred_region
      _
    $region13: #{tpu_custom_call.1} parent=1 // pred_fallthru
      _
    // Predicated region
    $region14: #{tpu_custom_call.1} parent=1 // pred_check
      _
    $region15: #{tpu_custom_call.1} parent=1 // pred_check_branch
      %33 = sbr.rel (0) target = $region17
    $region16: #{tpu_custom_call.1} parent=1 // pred_region
      _
    $region17: #{tpu_custom_call.1} parent=1 // pred_fallthru
      _
    // Predicated region
    $region18: #{tpu_custom_call.1} parent=1 // pred_check
      _
    $region19: #{tpu_custom_call.1} parent=1 // pred_check_branch
      %35 = sbr.rel (0) target = $region21
    $region20: #{tpu_custom_call.1} parent=1 // pred_region
      _
    $region21: #{tpu_custom_call.1} parent=1 // pred_fallthru
      _
    // Predicated region
    $region22: #{tpu_custom_call.1} parent=1 // pred_check
      _
    $region23: #{tpu_custom_call.1} parent=1 // pred_check_branch
      %37 = sbr.rel (0) target = $region25
    $region24: #{tpu_custom_call.1} parent=1 // pred_region
      _
    $region25: #{tpu_custom_call.1} parent=1 // pred_fallthru
      _
    // Predicated region
    $region26: #{tpu_custom_call.1} parent=1 // pred_check
      _
    $region27: #{tpu_custom_call.1} parent=1 // pred_check_branch
      %39 = sbr.rel (0) target = $region29
    $region28: #{tpu_custom_call.1} parent=1 // pred_region
      _
    $region29: #{tpu_custom_call.1} parent=1 // pred_fallthru
      _
    // Predicated region
    $region30: #{tpu_custom_call.1} parent=1 // pred_check
      _
    $region31: #{tpu_custom_call.1} parent=1 // pred_check_branch
      %41 = sbr.rel (0) target = $region33
    $region32: #{tpu_custom_call.1} parent=1 // pred_region
      %42 = dma.done [#allocation5], 32
    $region33: #{tpu_custom_call.1} parent=1 // pred_fallthru
      _
    %v43 = vld [vmem:[%s2] sm:$0x1]
    %v44 = vld [vmem:[%s4] sm:$0x1]
    %v45 = vld [vmem:[%s3] sm:$0xff]
    %v46 = vld [vmem:[%s3 + $0x8] sm:$0xff]
    %v47 = vld [vmem:[%s3 + $0x10] sm:$0xff]
    %v48 = vld [vmem:[%s3 + $0x18] sm:$0xff]
    %v49 = vld [vmem:[#allocation4] sm:$0x3]
    %v50 = vld [vmem:[%s1] sm:$0x3]
    %52 = vset.pattern.permute.xlu0 0
    %53 = vperm.xlu0 %52, %v50
    %v54 = vpop.permute.xlu0 %53
    %v57 = vlaneseq
    %v58 = vshrl.u32 %v57, 7
    %v59 = vsub.s32 0, %v58
    %v60 = vrot.slane %v43, %v59
    %v62 = vmul.f32 %v54, %v60
    %v64 = vlaneseq
    %v65 = vshrl.u32 %v64, 7
    %v66 = vsub.s32 0, %v65
    %v67 = vrot.slane %v44, %v66
    %v69 = vadd.f32 %v62, %v67
    %vm70 = vcmask 261120
    %v72 = vsel %vm70, %v49, 0
    %74 = vmatprep.subr.mxu0 0.0
    %75 = vmatpush1.msra.mxu0 %v45
    %76 = vmatprep.subr.mxu0 0.0
    %77 = vmatpush1.msra.mxu0 %v46
    %78 = vmatprep.subr.mxu0 0.0
    %79 = vmatpush1.msra.mxu0 %v47
    %80 = vmatprep.subr.mxu0 0.0
    %81 = vmatpush1.msra.mxu0 %v48
    %82 = vmatprep.subr.mxu0 0.0
    %83 = vmatpush1.msra.mxu0 0.0
    %84 = vmatprep.subr.mxu0 0.0
    %85 = vmatpush1.msra.mxu0 0.0
    %86 = vmatprep.subr.mxu0 0.0
    %87 = vmatpush1.msra.mxu0 0.0
    %88 = vmatprep.subr.mxu0 0.0
    %89 = vmatpush1.msra.mxu0 0.0
    %90 = vmatprep.subr.mxu0 0.0
    %91 = vmatpush1.msra.mxu0 0.0
    %92 = vmatprep.subr.mxu0 0.0
    %93 = vmatpush1.msra.mxu0 0.0
    %94 = vmatprep.subr.mxu0 0.0
    %95 = vmatpush1.msra.mxu0 0.0
    %96 = vmatprep.subr.mxu0 0.0
    %97 = vmatpush1.msra.mxu0 0.0
    %98 = vmatprep.subr.mxu0 0.0
    %99 = vmatpush1.msra.mxu0 0.0
    %100 = vmatprep.subr.mxu0 0.0
    %101 = vmatpush1.msra.mxu0 0.0
    %102 = vmatprep.subr.mxu0 0.0
    %103 = vmatpush1.msra.mxu0 0.0
    %104 = vmatprep.subr.mxu0 0.0
    %105 = vmatpush1.msra.mxu0 0.0
    %106 = vmatprep.subr.mxu0 0.0
    %107 = vmatpush1.msra.mxu0 0.0
    %108 = vmatprep.subr.mxu0 0.0
    %109 = vmatpush1.msra.mxu0 0.0
    %110 = vmatprep.subr.mxu0 0.0
    %111 = vmatpush1.msra.mxu0 0.0
    %112 = vmatprep.subr.mxu0 0.0
    %113 = vmatpush1.msra.mxu0 0.0
    %114 = vmatprep.subr.mxu0 0.0
    %115 = vmatpush1.msra.mxu0 0.0
    %116 = vmatprep.subr.mxu0 0.0
    %117 = vmatpush1.msra.mxu0 0.0
    %118 = vmatprep.subr.mxu0 0.0
    %119 = vmatpush1.msra.mxu0 0.0
    %120 = vmatprep.subr.mxu0 0.0
    %121 = vmatpush1.msra.mxu0 0.0
    %122 = vmatprep.subr.mxu0 0.0
    %123 = vmatpush1.msra.mxu0 0.0
    %124 = vmatprep.subr.mxu0 0.0
    %125 = vmatpush1.msra.mxu0 0.0
    %126 = vmatprep.subr.mxu0 0.0
    %127 = vmatpush1.msra.mxu0 0.0
    %128 = vmatprep.subr.mxu0 0.0
    %129 = vmatpush1.msra.mxu0 0.0
    %130 = vmatprep.subr.mxu0 0.0
    %131 = vmatpush1.msra.mxu0 0.0
    %132 = vmatprep.subr.mxu0 0.0
    %133 = vmatpush1.msra.mxu0 0.0
    %134 = vmatprep.subr.mxu0 0.0
    %135 = vmatpush1.msra.mxu0 0.0
    %136 = vmatprep.subr.mxu0 0.0
    %137 = vmatpush1.msra.mxu0 0.0
    %138 = vmatprep.mubr.f32.mxu0 0.0
    %139 = vmatmul.mubr.f32.gmra.mrb[0].mxu0 %v72
    %v140 = vpop.f32.mrb[0].mxu0
    %v141 = vadd.f32 0.0, %v140
    %v142 = vpop.f32.mrb[0].mxu0
    %143 = vdwg.mxu0
    %v144 = vadd.f32 %v69, %v141
    %v145 = vtanh.pop %v144
    %vm146 = vcmask 254976
    %147 = vst.msk [vmem:[#allocation2] sm:$0x3] %vm146, %v145
    %s148 = scalar_lea.vmem %s1, 2
    %v149 = vld [vmem:[%s148] sm:$0x3]
    %151 = vset.pattern.permute.xlu0 0
    %152 = vperm.xlu0 %151, %v149
    %v153 = vpop.permute.xlu0 %152
    %v155 = vmul.f32 %v153, %v60
    %v156 = vadd.f32 %v155, %v67
    %v158 = vsel %vm70, %v145, 0
    %160 = vmatprep.subr.mxu0 0.0
    %161 = vmatpush1.msra.mxu0 %v45
    %162 = vmatprep.subr.mxu0 0.0
    %163 = vmatpush1.msra.mxu0 %v46
    %164 = vmatprep.subr.mxu0 0.0
    %165 = vmatpush1.msra.mxu0 %v47
    %166 = vmatprep.subr.mxu0 0.0
    %167 = vmatpush1.msra.mxu0 %v48
    %168 = vmatprep.subr.mxu0 0.0
    %169 = vmatpush1.msra.mxu0 0.0
    %170 = vmatprep.subr.mxu0 0.0
    %171 = vmatpush1.msra.mxu0 0.0
    %172 = vmatprep.subr.mxu0 0.0
    %173 = vmatpush1.msra.mxu0 0.0
    %174 = vmatprep.subr.mxu0 0.0
    %175 = vmatpush1.msra.mxu0 0.0
    %176 = vmatprep.subr.mxu0 0.0
    %177 = vmatpush1.msra.mxu0 0.0
    %178 = vmatprep.subr.mxu0 0.0
    %179 = vmatpush1.msra.mxu0 0.0
    %180 = vmatprep.subr.mxu0 0.0
    %181 = vmatpush1.msra.mxu0 0.0
    %182 = vmatprep.subr.mxu0 0.0
    %183 = vmatpush1.msra.mxu0 0.0
    %184 = vmatprep.subr.mxu0 0.0
    %185 = vmatpush1.msra.mxu0 0.0
    %186 = vmatprep.subr.mxu0 0.0
    %187 = vmatpush1.msra.mxu0 0.0
    %188 = vmatprep.subr.mxu0 0.0
    %189 = vmatpush1.msra.mxu0 0.0
    %190 = vmatprep.subr.mxu0 0.0
    %191 = vmatpush1.msra.mxu0 0.0
    %192 = vmatprep.subr.mxu0 0.0
    %193 = vmatpush1.msra.mxu0 0.0
    %194 = vmatprep.subr.mxu0 0.0
    %195 = vmatpush1.msra.mxu0 0.0
    %196 = vmatprep.subr.mxu0 0.0
    %197 = vmatpush1.msra.mxu0 0.0
    %198 = vmatprep.subr.mxu0 0.0
    %199 = vmatpush1.msra.mxu0 0.0
    %200 = vmatprep.subr.mxu0 0.0
    %201 = vmatpush1.msra.mxu0 0.0
    %202 = vmatprep.subr.mxu0 0.0
    %203 = vmatpush1.msra.mxu0 0.0
    %204 = vmatprep.subr.mxu0 0.0
    %205 = vmatpush1.msra.mxu0 0.0
    %206 = vmatprep.subr.mxu0 0.0
    %207 = vmatpush1.msra.mxu0 0.0
    %208 = vmatprep.subr.mxu0 0.0
    %209 = vmatpush1.msra.mxu0 0.0
    %210 = vmatprep.subr.mxu0 0.0
    %211 = vmatpush1.msra.mxu0 0.0
    %212 = vmatprep.subr.mxu0 0.0
    %213 = vmatpush1.msra.mxu0 0.0
    %214 = vmatprep.subr.mxu0 0.0
    %215 = vmatpush1.msra.mxu0 0.0
    %216 = vmatprep.subr.mxu0 0.0
    %217 = vmatpush1.msra.mxu0 0.0
    %218 = vmatprep.subr.mxu0 0.0
    %219 = vmatpush1.msra.mxu0 0.0
    %220 = vmatprep.subr.mxu0 0.0
    %221 = vmatpush1.msra.mxu0 0.0
    %222 = vmatprep.subr.mxu0 0.0
    %223 = vmatpush1.msra.mxu0 0.0
    %224 = vmatprep.mubr.f32.mxu0 0.0
    %225 = vmatmul.mubr.f32.gmra.mrb[0].mxu0 %v158
    %v226 = vpop.f32.mrb[0].mxu0
    %v227 = vadd.f32 0.0, %v226
    %v228 = vpop.f32.mrb[0].mxu0
    %229 = vdwg.mxu0
    %v230 = vadd.f32 %v156, %v227
    %v231 = vtanh.pop %v230
    %s232 = scalar_lea.vmem [#allocation2], 2
    %233 = vst.msk [vmem:[%s232] sm:$0x3] %vm146, %v231
    %s234 = scalar_lea.vmem %s1, 4
    %v235 = vld [vmem:[%s234] sm:$0x3]
    %237 = vset.pattern.permute.xlu0 0
    %238 = vperm.xlu0 %237, %v235
    %v239 = vpop.permute.xlu0 %238
    %v241 = vmul.f32 %v239, %v60
    %v242 = vadd.f32 %v241, %v67
    %v244 = vsel %vm70, %v231, 0
    %246 = vmatprep.subr.mxu0 0.0
    %247 = vmatpush1.msra.mxu0 %v45
    %248 = vmatprep.subr.mxu0 0.0
    %249 = vmatpush1.msra.mxu0 %v46
    %250 = vmatprep.subr.mxu0 0.0
    %251 = vmatpush1.msra.mxu0 %v47
    %252 = vmatprep.subr.mxu0 0.0
    %253 = vmatpush1.msra.mxu0 %v48
    %254 = vmatprep.subr.mxu0 0.0
    %255 = vmatpush1.msra.mxu0 0.0
    %256 = vmatprep.subr.mxu0 0.0
    %257 = vmatpush1.msra.mxu0 0.0
    %258 = vmatprep.subr.mxu0 0.0
    %259 = vmatpush1.msra.mxu0 0.0
    %260 = vmatprep.subr.mxu0 0.0
    %261 = vmatpush1.msra.mxu0 0.0
    %262 = vmatprep.subr.mxu0 0.0
    %263 = vmatpush1.msra.mxu0 0.0
    %264 = vmatprep.subr.mxu0 0.0
    %265 = vmatpush1.msra.mxu0 0.0
    %266 = vmatprep.subr.mxu0 0.0
    %267 = vmatpush1.msra.mxu0 0.0
    %268 = vmatprep.subr.mxu0 0.0
    %269 = vmatpush1.msra.mxu0 0.0
    %270 = vmatprep.subr.mxu0 0.0
    %271 = vmatpush1.msra.mxu0 0.0
    %272 = vmatprep.subr.mxu0 0.0
    %273 = vmatpush1.msra.mxu0 0.0
    %274 = vmatprep.subr.mxu0 0.0
    %275 = vmatpush1.msra.mxu0 0.0
    %276 = vmatprep.subr.mxu0 0.0
    %277 = vmatpush1.msra.mxu0 0.0
    %278 = vmatprep.subr.mxu0 0.0
    %279 = vmatpush1.msra.mxu0 0.0
    %280 = vmatprep.subr.mxu0 0.0
    %281 = vmatpush1.msra.mxu0 0.0
    %282 = vmatprep.subr.mxu0 0.0
    %283 = vmatpush1.msra.mxu0 0.0
    %284 = vmatprep.subr.mxu0 0.0
    %285 = vmatpush1.msra.mxu0 0.0
    %286 = vmatprep.subr.mxu0 0.0
    %287 = vmatpush1.msra.mxu0 0.0
    %288 = vmatprep.subr.mxu0 0.0
    %289 = vmatpush1.msra.mxu0 0.0
    %290 = vmatprep.subr.mxu0 0.0
    %291 = vmatpush1.msra.mxu0 0.0
    %292 = vmatprep.subr.mxu0 0.0
    %293 = vmatpush1.msra.mxu0 0.0
    %294 = vmatprep.subr.mxu0 0.0
    %295 = vmatpush1.msra.mxu0 0.0
    %296 = vmatprep.subr.mxu0 0.0
    %297 = vmatpush1.msra.mxu0 0.0
    %298 = vmatprep.subr.mxu0 0.0
    %299 = vmatpush1.msra.mxu0 0.0
    %300 = vmatprep.subr.mxu0 0.0
    %301 = vmatpush1.msra.mxu0 0.0
    %302 = vmatprep.subr.mxu0 0.0
    %303 = vmatpush1.msra.mxu0 0.0
    %304 = vmatprep.subr.mxu0 0.0
    %305 = vmatpush1.msra.mxu0 0.0
    %306 = vmatprep.subr.mxu0 0.0
    %307 = vmatpush1.msra.mxu0 0.0
    %308 = vmatprep.subr.mxu0 0.0
    %309 = vmatpush1.msra.mxu0 0.0
    %310 = vmatprep.mubr.f32.mxu0 0.0
    %311 = vmatmul.mubr.f32.gmra.mrb[0].mxu0 %v244
    %v312 = vpop.f32.mrb[0].mxu0
    %v313 = vadd.f32 0.0, %v312
    %v314 = vpop.f32.mrb[0].mxu0
    %315 = vdwg.mxu0
    %v316 = vadd.f32 %v242, %v313
    %v317 = vtanh.pop %v316
    %s318 = scalar_lea.vmem [#allocation2], 4
    %319 = vst.msk [vmem:[%s318] sm:$0x3] %vm146, %v317
    %s320 = scalar_lea.vmem %s1, 6
    %v321 = vld [vmem:[%s320] sm:$0x3]
    %323 = vset.pattern.permute.xlu0 0
    %324 = vperm.xlu0 %323, %v321
    %v325 = vpop.permute.xlu0 %324
    %v327 = vmul.f32 %v325, %v60
    %v328 = vadd.f32 %v327, %v67
    %v330 = vsel %vm70, %v317, 0
    %332 = vmatprep.subr.mxu0 0.0
    %333 = vmatpush1.msra.mxu0 %v45
    %334 = vmatprep.subr.mxu0 0.0
    %335 = vmatpush1.msra.mxu0 %v46
    %336 = vmatprep.subr.mxu0 0.0
    %337 = vmatpush1.msra.mxu0 %v47
    %338 = vmatprep.subr.mxu0 0.0
    %339 = vmatpush1.msra.mxu0 %v48
    %340 = vmatprep.subr.mxu0 0.0
    %341 = vmatpush1.msra.mxu0 0.0
    %342 = vmatprep.subr.mxu0 0.0
    %343 = vmatpush1.msra.mxu0 0.0
    %344 = vmatprep.subr.mxu0 0.0
    %345 = vmatpush1.msra.mxu0 0.0
    %346 = vmatprep.subr.mxu0 0.0
    %347 = vmatpush1.msra.mxu0 0.0
    %348 = vmatprep.subr.mxu0 0.0
    %349 = vmatpush1.msra.mxu0 0.0
    %350 = vmatprep.subr.mxu0 0.0
    %351 = vmatpush1.msra.mxu0 0.0
    %352 = vmatprep.subr.mxu0 0.0
    %353 = vmatpush1.msra.mxu0 0.0
    %354 = vmatprep.subr.mxu0 0.0
    %355 = vmatpush1.msra.mxu0 0.0
    %356 = vmatprep.subr.mxu0 0.0
    %357 = vmatpush1.msra.mxu0 0.0
    %358 = vmatprep.subr.mxu0 0.0
    %359 = vmatpush1.msra.mxu0 0.0
    %360 = vmatprep.subr.mxu0 0.0
    %361 = vmatpush1.msra.mxu0 0.0
    %362 = vmatprep.subr.mxu0 0.0
    %363 = vmatpush1.msra.mxu0 0.0
    %364 = vmatprep.subr.mxu0 0.0
    %365 = vmatpush1.msra.mxu0 0.0
    %366 = vmatprep.subr.mxu0 0.0
    %367 = vmatpush1.msra.mxu0 0.0
    %368 = vmatprep.subr.mxu0 0.0
    %369 = vmatpush1.msra.mxu0 0.0
    %370 = vmatprep.subr.mxu0 0.0
    %371 = vmatpush1.msra.mxu0 0.0
    %372 = vmatprep.subr.mxu0 0.0
    %373 = vmatpush1.msra.mxu0 0.0
    %374 = vmatprep.subr.mxu0 0.0
    %375 = vmatpush1.msra.mxu0 0.0
    %376 = vmatprep.subr.mxu0 0.0
    %377 = vmatpush1.msra.mxu0 0.0
    %378 = vmatprep.subr.mxu0 0.0
    %379 = vmatpush1.msra.mxu0 0.0
    %380 = vmatprep.subr.mxu0 0.0
    %381 = vmatpush1.msra.mxu0 0.0
    %382 = vmatprep.subr.mxu0 0.0
    %383 = vmatpush1.msra.mxu0 0.0
    %384 = vmatprep.subr.mxu0 0.0
    %385 = vmatpush1.msra.mxu0 0.0
    %386 = vmatprep.subr.mxu0 0.0
    %387 = vmatpush1.msra.mxu0 0.0
    %388 = vmatprep.subr.mxu0 0.0
    %389 = vmatpush1.msra.mxu0 0.0
    %390 = vmatprep.subr.mxu0 0.0
    %391 = vmatpush1.msra.mxu0 0.0
    %392 = vmatprep.subr.mxu0 0.0
    %393 = vmatpush1.msra.mxu0 0.0
    %394 = vmatprep.subr.mxu0 0.0
    %395 = vmatpush1.msra.mxu0 0.0
    %396 = vmatprep.mubr.f32.mxu0 0.0
    %397 = vmatmul.mubr.f32.gmra.mrb[0].mxu0 %v330
    %v398 = vpop.f32.mrb[0].mxu0
    %v399 = vadd.f32 0.0, %v398
    %v400 = vpop.f32.mrb[0].mxu0
    %401 = vdwg.mxu0
    %v402 = vadd.f32 %v328, %v399
    %v403 = vtanh.pop %v402
    %s404 = scalar_lea.vmem [#allocation2], 6
    %405 = vst.msk [vmem:[%s404] sm:$0x3] %vm146, %v403
    %s406 = scalar_lea.vmem %s1, 8
    %v407 = vld [vmem:[%s406] sm:$0x3]
    %409 = vset.pattern.permute.xlu0 0
    %410 = vperm.xlu0 %409, %v407
    %v411 = vpop.permute.xlu0 %410
    %v413 = vmul.f32 %v411, %v60
    %v414 = vadd.f32 %v413, %v67
    %v416 = vsel %vm70, %v403, 0
    %418 = vmatprep.subr.mxu0 0.0
    %419 = vmatpush1.msra.mxu0 %v45
    %420 = vmatprep.subr.mxu0 0.0
    %421 = vmatpush1.msra.mxu0 %v46
    %422 = vmatprep.subr.mxu0 0.0
    %423 = vmatpush1.msra.mxu0 %v47
    %424 = vmatprep.subr.mxu0 0.0
    %425 = vmatpush1.msra.mxu0 %v48
    %426 = vmatprep.subr.mxu0 0.0
    %427 = vmatpush1.msra.mxu0 0.0
    %428 = vmatprep.subr.mxu0 0.0
    %429 = vmatpush1.msra.mxu0 0.0
    %430 = vmatprep.subr.mxu0 0.0
    %431 = vmatpush1.msra.mxu0 0.0
    %432 = vmatprep.subr.mxu0 0.0
    %433 = vmatpush1.msra.mxu0 0.0
    %434 = vmatprep.subr.mxu0 0.0
    %435 = vmatpush1.msra.mxu0 0.0
    %436 = vmatprep.subr.mxu0 0.0
    %437 = vmatpush1.msra.mxu0 0.0
    %438 = vmatprep.subr.mxu0 0.0
    %439 = vmatpush1.msra.mxu0 0.0
    %440 = vmatprep.subr.mxu0 0.0
    %441 = vmatpush1.msra.mxu0 0.0
    %442 = vmatprep.subr.mxu0 0.0
    %443 = vmatpush1.msra.mxu0 0.0
    %444 = vmatprep.subr.mxu0 0.0
    %445 = vmatpush1.msra.mxu0 0.0
    %446 = vmatprep.subr.mxu0 0.0
    %447 = vmatpush1.msra.mxu0 0.0
    %448 = vmatprep.subr.mxu0 0.0
    %449 = vmatpush1.msra.mxu0 0.0
    %450 = vmatprep.subr.mxu0 0.0
    %451 = vmatpush1.msra.mxu0 0.0
    %452 = vmatprep.subr.mxu0 0.0
    %453 = vmatpush1.msra.mxu0 0.0
    %454 = vmatprep.subr.mxu0 0.0
    %455 = vmatpush1.msra.mxu0 0.0
    %456 = vmatprep.subr.mxu0 0.0
    %457 = vmatpush1.msra.mxu0 0.0
    %458 = vmatprep.subr.mxu0 0.0
    %459 = vmatpush1.msra.mxu0 0.0
    %460 = vmatprep.subr.mxu0 0.0
    %461 = vmatpush1.msra.mxu0 0.0
    %462 = vmatprep.subr.mxu0 0.0
    %463 = vmatpush1.msra.mxu0 0.0
    %464 = vmatprep.subr.mxu0 0.0
    %465 = vmatpush1.msra.mxu0 0.0
    %466 = vmatprep.subr.mxu0 0.0
    %467 = vmatpush1.msra.mxu0 0.0
    %468 = vmatprep.subr.mxu0 0.0
    %469 = vmatpush1.msra.mxu0 0.0
    %470 = vmatprep.subr.mxu0 0.0
    %471 = vmatpush1.msra.mxu0 0.0
    %472 = vmatprep.subr.mxu0 0.0
    %473 = vmatpush1.msra.mxu0 0.0
    %474 = vmatprep.subr.mxu0 0.0
    %475 = vmatpush1.msra.mxu0 0.0
    %476 = vmatprep.subr.mxu0 0.0
    %477 = vmatpush1.msra.mxu0 0.0
    %478 = vmatprep.subr.mxu0 0.0
    %479 = vmatpush1.msra.mxu0 0.0
    %480 = vmatprep.subr.mxu0 0.0
    %481 = vmatpush1.msra.mxu0 0.0
    %482 = vmatprep.mubr.f32.mxu0 0.0
    %483 = vmatmul.mubr.f32.gmra.mrb[0].mxu0 %v416
    %v484 = vpop.f32.mrb[0].mxu0
    %v485 = vadd.f32 0.0, %v484
    %v486 = vpop.f32.mrb[0].mxu0
    %487 = vdwg.mxu0
    %v488 = vadd.f32 %v414, %v485
    %v489 = vtanh.pop %v488
    %s490 = scalar_lea.vmem [#allocation2], 8
    %491 = vst.msk [vmem:[%s490] sm:$0x3] %vm146, %v489
    %s492 = scalar_lea.vmem %s1, 10
    %v493 = vld [vmem:[%s492] sm:$0x3]
    %495 = vset.pattern.permute.xlu0 0
    %496 = vperm.xlu0 %495, %v493
    %v497 = vpop.permute.xlu0 %496
    %v499 = vmul.f32 %v497, %v60
    %v500 = vadd.f32 %v499, %v67
    %v502 = vsel %vm70, %v489, 0
    %504 = vmatprep.subr.mxu0 0.0
    %505 = vmatpush1.msra.mxu0 %v45
    %506 = vmatprep.subr.mxu0 0.0
    %507 = vmatpush1.msra.mxu0 %v46
    %508 = vmatprep.subr.mxu0 0.0
    %509 = vmatpush1.msra.mxu0 %v47
    %510 = vmatprep.subr.mxu0 0.0
    %511 = vmatpush1.msra.mxu0 %v48
    %512 = vmatprep.subr.mxu0 0.0
    %513 = vmatpush1.msra.mxu0 0.0
    %514 = vmatprep.subr.mxu0 0.0
    %515 = vmatpush1.msra.mxu0 0.0
    %516 = vmatprep.subr.mxu0 0.0
    %517 = vmatpush1.msra.mxu0 0.0
    %518 = vmatprep.subr.mxu0 0.0
    %519 = vmatpush1.msra.mxu0 0.0
    %520 = vmatprep.subr.mxu0 0.0
    %521 = vmatpush1.msra.mxu0 0.0
    %522 = vmatprep.subr.mxu0 0.0
    %523 = vmatpush1.msra.mxu0 0.0
    %524 = vmatprep.subr.mxu0 0.0
    %525 = vmatpush1.msra.mxu0 0.0
    %526 = vmatprep.subr.mxu0 0.0
    %527 = vmatpush1.msra.mxu0 0.0
    %528 = vmatprep.subr.mxu0 0.0
    %529 = vmatpush1.msra.mxu0 0.0
    %530 = vmatprep.subr.mxu0 0.0
    %531 = vmatpush1.msra.mxu0 0.0
    %532 = vmatprep.subr.mxu0 0.0
    %533 = vmatpush1.msra.mxu0 0.0
    %534 = vmatprep.subr.mxu0 0.0
    %535 = vmatpush1.msra.mxu0 0.0
    %536 = vmatprep.subr.mxu0 0.0
    %537 = vmatpush1.msra.mxu0 0.0
    %538 = vmatprep.subr.mxu0 0.0
    %539 = vmatpush1.msra.mxu0 0.0
    %540 = vmatprep.subr.mxu0 0.0
    %541 = vmatpush1.msra.mxu0 0.0
    %542 = vmatprep.subr.mxu0 0.0
    %543 = vmatpush1.msra.mxu0 0.0
    %544 = vmatprep.subr.mxu0 0.0
    %545 = vmatpush1.msra.mxu0 0.0
    %546 = vmatprep.subr.mxu0 0.0
    %547 = vmatpush1.msra.mxu0 0.0
    %548 = vmatprep.subr.mxu0 0.0
    %549 = vmatpush1.msra.mxu0 0.0
    %550 = vmatprep.subr.mxu0 0.0
    %551 = vmatpush1.msra.mxu0 0.0
    %552 = vmatprep.subr.mxu0 0.0
    %553 = vmatpush1.msra.mxu0 0.0
    %554 = vmatprep.subr.mxu0 0.0
    %555 = vmatpush1.msra.mxu0 0.0
    %556 = vmatprep.subr.mxu0 0.0
    %557 = vmatpush1.msra.mxu0 0.0
    %558 = vmatprep.subr.mxu0 0.0
    %559 = vmatpush1.msra.mxu0 0.0
    %560 = vmatprep.subr.mxu0 0.0
    %561 = vmatpush1.msra.mxu0 0.0
    %562 = vmatprep.subr.mxu0 0.0
    %563 = vmatpush1.msra.mxu0 0.0
    %564 = vmatprep.subr.mxu0 0.0
    %565 = vmatpush1.msra.mxu0 0.0
    %566 = vmatprep.subr.mxu0 0.0
    %567 = vmatpush1.msra.mxu0 0.0
    %568 = vmatprep.mubr.f32.mxu0 0.0
    %569 = vmatmul.mubr.f32.gmra.mrb[0].mxu0 %v502
    %v570 = vpop.f32.mrb[0].mxu0
    %v571 = vadd.f32 0.0, %v570
    %v572 = vpop.f32.mrb[0].mxu0
    %573 = vdwg.mxu0
    %v574 = vadd.f32 %v500, %v571
    %v575 = vtanh.pop %v574
    %s576 = scalar_lea.vmem [#allocation2], 10
    %577 = vst.msk [vmem:[%s576] sm:$0x3] %vm146, %v575
    %s578 = scalar_lea.vmem %s1, 12
    %v579 = vld [vmem:[%s578] sm:$0x3]
    %581 = vset.pattern.permute.xlu0 0
    %582 = vperm.xlu0 %581, %v579
    %v583 = vpop.permute.xlu0 %582
    %v585 = vmul.f32 %v583, %v60
    %v586 = vadd.f32 %v585, %v67
    %v588 = vsel %vm70, %v575, 0
    %590 = vmatprep.subr.mxu0 0.0
    %591 = vmatpush1.msra.mxu0 %v45
    %592 = vmatprep.subr.mxu0 0.0
    %593 = vmatpush1.msra.mxu0 %v46
    %594 = vmatprep.subr.mxu0 0.0
    %595 = vmatpush1.msra.mxu0 %v47
    %596 = vmatprep.subr.mxu0 0.0
    %597 = vmatpush1.msra.mxu0 %v48
    %598 = vmatprep.subr.mxu0 0.0
    %599 = vmatpush1.msra.mxu0 0.0
    %600 = vmatprep.subr.mxu0 0.0
    %601 = vmatpush1.msra.mxu0 0.0
    %602 = vmatprep.subr.mxu0 0.0
    %603 = vmatpush1.msra.mxu0 0.0
    %604 = vmatprep.subr.mxu0 0.0
    %605 = vmatpush1.msra.mxu0 0.0
    %606 = vmatprep.subr.mxu0 0.0
    %607 = vmatpush1.msra.mxu0 0.0
    %608 = vmatprep.subr.mxu0 0.0
    %609 = vmatpush1.msra.mxu0 0.0
    %610 = vmatprep.subr.mxu0 0.0
    %611 = vmatpush1.msra.mxu0 0.0
    %612 = vmatprep.subr.mxu0 0.0
    %613 = vmatpush1.msra.mxu0 0.0
    %614 = vmatprep.subr.mxu0 0.0
    %615 = vmatpush1.msra.mxu0 0.0
    %616 = vmatprep.subr.mxu0 0.0
    %617 = vmatpush1.msra.mxu0 0.0
    %618 = vmatprep.subr.mxu0 0.0
    %619 = vmatpush1.msra.mxu0 0.0
    %620 = vmatprep.subr.mxu0 0.0
    %621 = vmatpush1.msra.mxu0 0.0
    %622 = vmatprep.subr.mxu0 0.0
    %623 = vmatpush1.msra.mxu0 0.0
    %624 = vmatprep.subr.mxu0 0.0
    %625 = vmatpush1.msra.mxu0 0.0
    %626 = vmatprep.subr.mxu0 0.0
    %627 = vmatpush1.msra.mxu0 0.0
    %628 = vmatprep.subr.mxu0 0.0
    %629 = vmatpush1.msra.mxu0 0.0
    %630 = vmatprep.subr.mxu0 0.0
    %631 = vmatpush1.msra.mxu0 0.0
    %632 = vmatprep.subr.mxu0 0.0
    %633 = vmatpush1.msra.mxu0 0.0
    %634 = vmatprep.subr.mxu0 0.0
    %635 = vmatpush1.msra.mxu0 0.0
    %636 = vmatprep.subr.mxu0 0.0
    %637 = vmatpush1.msra.mxu0 0.0
    %638 = vmatprep.subr.mxu0 0.0
    %639 = vmatpush1.msra.mxu0 0.0
    %640 = vmatprep.subr.mxu0 0.0
    %641 = vmatpush1.msra.mxu0 0.0
    %642 = vmatprep.subr.mxu0 0.0
    %643 = vmatpush1.msra.mxu0 0.0
    %644 = vmatprep.subr.mxu0 0.0
    %645 = vmatpush1.msra.mxu0 0.0
    %646 = vmatprep.subr.mxu0 0.0
    %647 = vmatpush1.msra.mxu0 0.0
    %648 = vmatprep.subr.mxu0 0.0
    %649 = vmatpush1.msra.mxu0 0.0
    %650 = vmatprep.subr.mxu0 0.0
    %651 = vmatpush1.msra.mxu0 0.0
    %652 = vmatprep.subr.mxu0 0.0
    %653 = vmatpush1.msra.mxu0 0.0
    %654 = vmatprep.mubr.f32.mxu0 0.0
    %655 = vmatmul.mubr.f32.gmra.mrb[0].mxu0 %v588
    %v656 = vpop.f32.mrb[0].mxu0
    %v657 = vadd.f32 0.0, %v656
    %v658 = vpop.f32.mrb[0].mxu0
    %659 = vdwg.mxu0
    %v660 = vadd.f32 %v586, %v657
    %v661 = vtanh.pop %v660
    %s662 = scalar_lea.vmem [#allocation2], 12
    %663 = vst.msk [vmem:[%s662] sm:$0x3] %vm146, %v661
    %s664 = scalar_lea.vmem %s1, 14
    %v665 = vld [vmem:[%s664] sm:$0x3]
    %667 = vset.pattern.permute.xlu0 0
    %668 = vperm.xlu0 %667, %v665
    %v669 = vpop.permute.xlu0 %668
    %v671 = vmul.f32 %v669, %v60
    %v672 = vadd.f32 %v671, %v67
    %v674 = vsel %vm70, %v661, 0
    %676 = vmatprep.subr.mxu0 0.0
    %677 = vmatpush1.msra.mxu0 %v45
    %678 = vmatprep.subr.mxu0 0.0
    %679 = vmatpush1.msra.mxu0 %v46
    %680 = vmatprep.subr.mxu0 0.0
    %681 = vmatpush1.msra.mxu0 %v47
    %682 = vmatprep.subr.mxu0 0.0
    %683 = vmatpush1.msra.mxu0 %v48
    %684 = vmatprep.subr.mxu0 0.0
    %685 = vmatpush1.msra.mxu0 0.0
    %686 = vmatprep.subr.mxu0 0.0
    %687 = vmatpush1.msra.mxu0 0.0
    %688 = vmatprep.subr.mxu0 0.0
    %689 = vmatpush1.msra.mxu0 0.0
    %690 = vmatprep.subr.mxu0 0.0
    %691 = vmatpush1.msra.mxu0 0.0
    %692 = vmatprep.subr.mxu0 0.0
    %693 = vmatpush1.msra.mxu0 0.0
    %694 = vmatprep.subr.mxu0 0.0
    %695 = vmatpush1.msra.mxu0 0.0
    %696 = vmatprep.subr.mxu0 0.0
    %697 = vmatpush1.msra.mxu0 0.0
    %698 = vmatprep.subr.mxu0 0.0
    %699 = vmatpush1.msra.mxu0 0.0
    %700 = vmatprep.subr.mxu0 0.0
    %701 = vmatpush1.msra.mxu0 0.0
    %702 = vmatprep.subr.mxu0 0.0
    %703 = vmatpush1.msra.mxu0 0.0
    %704 = vmatprep.subr.mxu0 0.0
    %705 = vmatpush1.msra.mxu0 0.0
    %706 = vmatprep.subr.mxu0 0.0
    %707 = vmatpush1.msra.mxu0 0.0
    %708 = vmatprep.subr.mxu0 0.0
    %709 = vmatpush1.msra.mxu0 0.0
    %710 = vmatprep.subr.mxu0 0.0
    %711 = vmatpush1.msra.mxu0 0.0
    %712 = vmatprep.subr.mxu0 0.0
    %713 = vmatpush1.msra.mxu0 0.0
    %714 = vmatprep.subr.mxu0 0.0
    %715 = vmatpush1.msra.mxu0 0.0
    %716 = vmatprep.subr.mxu0 0.0
    %717 = vmatpush1.msra.mxu0 0.0
    %718 = vmatprep.subr.mxu0 0.0
    %719 = vmatpush1.msra.mxu0 0.0
    %720 = vmatprep.subr.mxu0 0.0
    %721 = vmatpush1.msra.mxu0 0.0
    %722 = vmatprep.subr.mxu0 0.0
    %723 = vmatpush1.msra.mxu0 0.0
    %724 = vmatprep.subr.mxu0 0.0
    %725 = vmatpush1.msra.mxu0 0.0
    %726 = vmatprep.subr.mxu0 0.0
    %727 = vmatpush1.msra.mxu0 0.0
    %728 = vmatprep.subr.mxu0 0.0
    %729 = vmatpush1.msra.mxu0 0.0
    %730 = vmatprep.subr.mxu0 0.0
    %731 = vmatpush1.msra.mxu0 0.0
    %732 = vmatprep.subr.mxu0 0.0
    %733 = vmatpush1.msra.mxu0 0.0
    %734 = vmatprep.subr.mxu0 0.0
    %735 = vmatpush1.msra.mxu0 0.0
    %736 = vmatprep.subr.mxu0 0.0
    %737 = vmatpush1.msra.mxu0 0.0
    %738 = vmatprep.subr.mxu0 0.0
    %739 = vmatpush1.msra.mxu0 0.0
    %740 = vmatprep.mubr.f32.mxu0 0.0
    %741 = vmatmul.mubr.f32.gmra.mrb[0].mxu0 %v674
    %v742 = vpop.f32.mrb[0].mxu0
    %v743 = vadd.f32 0.0, %v742
    %v744 = vpop.f32.mrb[0].mxu0
    %745 = vdwg.mxu0
    %v746 = vadd.f32 %v672, %v743
    %v747 = vtanh.pop %v746
    %s748 = scalar_lea.vmem [#allocation2], 14
    %749 = vst.msk [vmem:[%s748] sm:$0x3] %vm146, %v747
    %750 = vst.msk [vmem:[#allocation7] sm:$0x3] %vm146, %v747
    %v751 = vld [vmem:[#allocation2] sm:$0x3]
    %v752 = vld [vmem:[#allocation2 + $0x2] sm:$0x3]
    %v753 = vld [vmem:[#allocation2 + $0x4] sm:$0x3]
    %v754 = vld [vmem:[#allocation2 + $0x6] sm:$0x3]
    %v755 = vld [vmem:[#allocation2 + $0x8] sm:$0x3]
    %v756 = vld [vmem:[#allocation2 + $0xa] sm:$0x3]
    %v757 = vld [vmem:[#allocation2 + $0xc] sm:$0x3]
    %v758 = vld [vmem:[#allocation2 + $0xe] sm:$0x3]
    %v759 = vld [vmem:[%s5] sm:$0x1]
    %v761 = vlaneseq
    %v762 = vshrl.u32 %v761, 7
    %v763 = vsub.s32 0, %v762
    %v764 = vrot.slane %v759, %v763
    %v766 = vmul.f32 %v751, %v764
    %v767 = vmul.f32 %v752, %v764
    %v768 = vmul.f32 %v753, %v764
    %v769 = vmul.f32 %v754, %v764
    %v770 = vmul.f32 %v755, %v764
    %v771 = vmul.f32 %v756, %v764
    %v772 = vmul.f32 %v757, %v764
    %v773 = vmul.f32 %v758, %v764
    %v774 = vsel %vm146, %v766, 0.0
    %775 = vadd.xlane.f32.xlu0 %v774
    %v776 = vpop.xlane.xlu0 %775
    %v777 = vsel %vm146, %v767, 0.0
    %778 = vadd.xlane.f32.xlu0 %v777
    %v779 = vpop.xlane.xlu0 %778
    %v780 = vsel %vm146, %v768, 0.0
    %781 = vadd.xlane.f32.xlu0 %v780
    %v782 = vpop.xlane.xlu0 %781
    %v783 = vsel %vm146, %v769, 0.0
    %784 = vadd.xlane.f32.xlu0 %v783
    %v785 = vpop.xlane.xlu0 %784
    %v786 = vsel %vm146, %v770, 0.0
    %787 = vadd.xlane.f32.xlu0 %v786
    %v788 = vpop.xlane.xlu0 %787
    %v789 = vsel %vm146, %v771, 0.0
    %790 = vadd.xlane.f32.xlu0 %v789
    %v791 = vpop.xlane.xlu0 %790
    %v792 = vsel %vm146, %v772, 0.0
    %793 = vadd.xlane.f32.xlu0 %v792
    %v794 = vpop.xlane.xlu0 %793
    %v795 = vsel %vm146, %v773, 0.0
    %796 = vadd.xlane.f32.xlu0 %v795
    %v797 = vpop.xlane.xlu0 %796
    %v798 = vld [vmem:[#allocation3] sm:$0x1]
    %v800 = vlaneseq
    %v801 = vshrl.u32 %v800, 7
    %v802 = vsub.s32 0, %v801
    %v803 = vrot.slane %v798, %v802
    %804 = vset.pattern.permute.xlu0 0
    %805 = vperm.xlu0 %804, %v803
    %v806 = vpop.permute.xlu0 %805
    %v808 = vadd.f32 %v776, %v806
    %v809 = vadd.f32 %v779, %v806
    %v810 = vadd.f32 %v782, %v806
    %v811 = vadd.f32 %v785, %v806
    %v812 = vadd.f32 %v788, %v806
    %v813 = vadd.f32 %v791, %v806
    %v814 = vadd.f32 %v794, %v806
    %v815 = vadd.f32 %v797, %v806
    %v824 = vlaneseq
    %v825 = vand.u32 %v824, 127
    %v826 = vlaneseq
    %v827 = vshrl.u32 %v826, 7
    %v828 = vsub.s32 %v825, %v827
    %v829 = vrot.slane %v808, %v828
    %v830 = vlaneseq
    %v831 = vshrl.u32 %v830, 7
    %v832 = vsub.s32 %v825, %v831
    %v833 = vrot.slane %v809, %v832
    %v834 = vlaneseq
    %v835 = vshrl.u32 %v834, 7
    %v836 = vsub.s32 %v825, %v835
    %v837 = vrot.slane %v810, %v836
    %v838 = vlaneseq
    %v839 = vshrl.u32 %v838, 7
    %v840 = vsub.s32 %v825, %v839
    %v841 = vrot.slane %v811, %v840
    %v842 = vlaneseq
    %v843 = vshrl.u32 %v842, 7
    %v844 = vsub.s32 %v825, %v843
    %v845 = vrot.slane %v812, %v844
    %v846 = vlaneseq
    %v847 = vshrl.u32 %v846, 7
    %v848 = vsub.s32 %v825, %v847
    %v849 = vrot.slane %v813, %v848
    %v850 = vlaneseq
    %v851 = vshrl.u32 %v850, 7
    %v852 = vsub.s32 %v825, %v851
    %v853 = vrot.slane %v814, %v852
    %v854 = vlaneseq
    %v855 = vshrl.u32 %v854, 7
    %v856 = vsub.s32 %v825, %v855
    %v857 = vrot.slane %v815, %v856
    %vm858 = vcmask 1041409
    %v859 = vsel %vm858, %v833, %v829
    %vm860 = vcmask 1042434
    %v861 = vsel %vm860, %v837, %v859
    %vm862 = vcmask 1043459
    %v863 = vsel %vm862, %v841, %v861
    %vm864 = vcmask 1044484
    %v865 = vsel %vm864, %v845, %v863
    %vm866 = vcmask 1045509
    %v867 = vsel %vm866, %v849, %v865
    %vm868 = vcmask 1046534
    %v869 = vsel %vm868, %v853, %v867
    %vm870 = vcmask 1047559
    %v871 = vsel %vm870, %v857, %v869
    %vm873 = vcmask 15360
    %874 = vst.msk [vmem:[%s7] sm:$0xff] %vm873, %v871
    // Predicated region
    $region34: #{tpu_custom_call.1} parent=1 // pred_check
      _
    $region35: #{tpu_custom_call.1} parent=1 // pred_check_branch
      %876 = sbr.rel (0) target = $region37
    $region36: #{tpu_custom_call.1} parent=1 // pred_region
      _
    $region37: #{tpu_custom_call.1} parent=1 // pred_fallthru
      _
    // Predicated region
    $region38: #{tpu_custom_call.1} parent=1 // pred_check
      _
    $region39: #{tpu_custom_call.1} parent=1 // pred_check_branch
      %878 = sbr.rel (0) target = $region41
    $region40: #{tpu_custom_call.1} parent=1 // pred_region
      %s880 = ssub.s32 32, 32
      %881 = vsyncadd [#allocation6], %s880
      %s883 = sshll.u32 [#allocation7], 4
      %s884 = int_to_ptr.vmem [resolvable:$true] %s883
      %886 = dma.vmem_to_hbm [thread:$0]  %s884, 32, %s8, [#allocation6]
    $region41: #{tpu_custom_call.1} parent=1 // pred_fallthru
      _
    // Predicated region
    $region42: #{tpu_custom_call.1} parent=1 // pred_check
      _
    $region43: #{tpu_custom_call.1} parent=1 // pred_check_branch
      %888 = sbr.rel (0) target = $region45
    $region44: #{tpu_custom_call.1} parent=1 // pred_region
      _
    $region45: #{tpu_custom_call.1} parent=1 // pred_fallthru
      _
    // Predicated region
    $region46: #{tpu_custom_call.1} parent=1 // pred_check
      _
    $region47: #{tpu_custom_call.1} parent=1 // pred_check_branch
      %890 = sbr.rel (0) target = $region49
    $region48: #{tpu_custom_call.1} parent=1 // pred_region
      %891 = dma.done [#allocation6], 32
    $region49: #{tpu_custom_call.1} parent=1 // pred_fallthru
      _
    %892 = vsyncpa [#allocation5], 1
    %893 = vsyncpa [#allocation6], 1

</llo_original>
